<compile_context>
chip_gen: v7x
topology: tpu7x:2x2x1
jax: 0.10.0
libtpu: 0.0.40
codegen_flags: <defaults>
</compile_context>

<pallas_src>
import jax
import jax.numpy as jnp
from jax.experimental import pallas as pl
from jax.experimental.pallas import tpu as pltpu


def _round_up(n, m):
    return ((n + m - 1) // m) * m


def _policy_fused_kernel(x_ref, p_ref, out_ref):
    """Fused actor+critic MLP tile.

    x_ref   : (TB, Dp)            observation tile (features padded to mult of 8)
    p_ref   : (Dp + 2H + 8, 2H)   rows [0, Dp)        = W1 = [Wa1 | Wc1]
                                  rows [Dp, Dp+2H)    = W2 = blockdiag(Wa2, Wc2)
                                  row  Dp+2H + 0      = [ba1 | bc1]
                                  row  Dp+2H + 1      = [ba2 | bc2]
                                  row  Dp+2H + 2      = [0   | Wcl]
                                  row  Dp+2H + 3      = bcl (lane-broadcast)
    out_ref : (TB, 2H)            lanes [0,H): actor features, [H,2H): value
    """
    dp = x_ref.shape[1]
    h2 = out_ref.shape[1]
    h = h2 // 2
    base = dp + h2

    x = x_ref[...]
    w1 = p_ref[0:dp, :]
    w2 = p_ref[dp:base, :]
    b1 = p_ref[base + 0:base + 1, :]
    b2 = p_ref[base + 1:base + 2, :]
    wcl = p_ref[base + 2:base + 3, :]   # zeros in actor lanes, Wcl^T in critic lanes
    bcl = p_ref[base + 3:base + 4, :]   # critic-head bias broadcast across lanes

    # Layer 1: one 2H-wide matmul covers both actor and critic branches.
    y1 = jnp.tanh(jnp.dot(x, w1, preferred_element_type=jnp.float32) + b1)
    # Layer 2: block-diagonal weights keep the two branches independent.
    y2 = jnp.tanh(jnp.dot(y1, w2, preferred_element_type=jnp.float32) + b2)

    # Critic head (out_features = 1): VPU multiply + XLU lane reduction.
    v = jnp.sum(y2 * wcl, axis=-1, keepdims=True)             # (TB, 1)

    # Lane-dense output: actor features in [0,H), value (+ bias) in [H,2H).
    lane = jax.lax.broadcasted_iota(jnp.int32, y2.shape, 1)
    out_ref[...] = jnp.where(lane < h, y2, v + bcl)


def pack_params(params):
    """Pack the 10 Linear weights/biases into a single parameter slab."""
    f32 = jnp.float32
    d, h = params["wa1"].shape
    h2 = 2 * h
    dp = _round_up(d, 8)

    w1 = jnp.concatenate([params["wa1"], params["wc1"]], axis=1)           # (D, 2H)
    w1 = jnp.pad(w1, ((0, dp - d), (0, 0)))                                # (Dp, 2H)
    w2 = jnp.zeros((h2, h2), f32)
    w2 = w2.at[:h, :h].set(params["wa2"]).at[h:, h:].set(params["wc2"])    # blockdiag

    b1 = jnp.concatenate([params["ba1"], params["bc1"]], axis=1)           # (1, 2H)
    b2 = jnp.concatenate([params["ba2"], params["bc2"]], axis=1)           # (1, 2H)
    wcl = jnp.concatenate([jnp.zeros((1, h), f32), params["wcl"].T], axis=1)
    bcl = jnp.broadcast_to(params["bcl"], (1, h2))

    slab = jnp.concatenate(
        [w1, w2, b1, b2, wcl, bcl, jnp.zeros((4, h2), f32)], axis=0)       # (Dp+2H+8, 2H)
    return slab, dp


def policy_forward(x, rnn_hxs, masks, params, *, batch_tile=512):
    """Returns (value, actor_features, rnn_hxs), matching MLPBase.forward
    (non-recurrent path: masks only gate GRU state, so they are unused)."""
    del masks
    B, D = x.shape
    H = params["wa1"].shape[1]
    H2 = 2 * H

    p_slab, Dp = pack_params(params)

    # Batch tiling: one block when small; otherwise split into the minimal
    # number of 8-aligned tiles <= batch_tile so padding waste stays small.
    if B <= batch_tile:
        TB, Bp, n_tiles = B, B, 1
    else:
        n_tiles = pl.cdiv(B, batch_tile)
        TB = _round_up(pl.cdiv(B, n_tiles), 8)
        Bp = TB * n_tiles

    xp = x
    if Dp != D or Bp != B:
        xp = jnp.pad(x, ((0, Bp - B), (0, Dp - D)))

    out = pl.pallas_call(
        _policy_fused_kernel,
        out_shape=jax.ShapeDtypeStruct((Bp, H2), jnp.float32),
        grid=(n_tiles,),
        in_specs=[
            pl.BlockSpec((TB, Dp), lambda i: (i, 0)),
            pl.BlockSpec((Dp + H2 + 8, H2), lambda i: (0, 0)),  # params VMEM-resident
        ],
        out_specs=pl.BlockSpec((TB, H2), lambda i: (i, 0)),
        compiler_params=pltpu.CompilerParams(
            dimension_semantics=("parallel",),
            vmem_limit_bytes=32 << 20,   # safe on v5e/v6e (128 MiB) and v7x (64 MiB)
        ),
    )(xp, p_slab)

    actor_features = out[:B, :H]
    value = out[:B, H:H + 1]
    return value, actor_features, rnn_hxs


def init_params(key, num_inputs, hidden_size=64):
    """Deterministic init mirroring the PyTorch module:
    orthogonal(gain=sqrt(2)) for hidden layers, orthogonal(gain=1) for the
    critic head, zeros for biases.  Weights stored (in, out)."""
    ks = jax.random.split(key, 5)
    orth_g = jax.nn.initializers.orthogonal(scale=jnp.sqrt(2.0))
    orth_1 = jax.nn.initializers.orthogonal(scale=1.0)
    f32 = jnp.float32
    return {
        "wa1": orth_g(ks[0], (num_inputs, hidden_size), f32),
        "ba1": jnp.zeros((1, hidden_size), f32),
        "wa2": orth_g(ks[1], (hidden_size, hidden_size), f32),
        "ba2": jnp.zeros((1, hidden_size), f32),
        "wc1": orth_g(ks[2], (num_inputs, hidden_size), f32),
        "bc1": jnp.zeros((1, hidden_size), f32),
        "wc2": orth_g(ks[3], (hidden_size, hidden_size), f32),
        "bc2": jnp.zeros((1, hidden_size), f32),
        "wcl": orth_1(ks[4], (hidden_size, 1), f32),
        "bcl": jnp.zeros((1, 1), f32),
    }


def _reference(x, params):
    ha = jnp.tanh(x @ params["wa1"] + params["ba1"])
    ha = jnp.tanh(ha @ params["wa2"] + params["ba2"])
    hc = jnp.tanh(x @ params["wc1"] + params["bc1"])
    hc = jnp.tanh(hc @ params["wc2"] + params["bc2"])
    v = hc @ params["wcl"] + params["bcl"]
    return v, ha


if __name__ == "__main__":
    key = jax.random.PRNGKey(0)
    k_x, k_p, k_x2 = jax.random.split(key, 3)

    B, NUM_INPUTS, HIDDEN = 8, 32, 64
    x = jax.random.normal(k_x, (B, NUM_INPUTS), dtype=jnp.float32)
    rnn_hxs = jnp.zeros((B, 1), dtype=jnp.float32)   # recurrent_hidden_state_size == 1
    masks = jnp.ones((B, 1), dtype=jnp.float32)

    params = init_params(k_p, NUM_INPUTS, HIDDEN)

    value, actor_features, rnn_hxs_out = policy_forward(x, rnn_hxs, masks, params)
    jax.block_until_ready((value, actor_features, rnn_hxs_out))

    v_ref, a_ref = _reference(x, params)
    assert value.shape == (B, 1) and actor_features.shape == (B, HIDDEN)
    assert jnp.allclose(value, v_ref, atol=1e-5, rtol=1e-5)
    assert jnp.allclose(actor_features, a_ref, atol=1e-5, rtol=1e-5)
    assert jnp.allclose(rnn_hxs_out, rnn_hxs)

    # Exercise the batched-grid path (adaptive 8-aligned tiles, "parallel" axis).
    B2 = 1000
    x2 = jax.random.normal(k_x2, (B2, NUM_INPUTS), dtype=jnp.float32)
    v2, a2, _ = policy_forward(x2,
                               jnp.zeros((B2, 1), jnp.float32),
                               jnp.ones((B2, 1), jnp.float32),
                               params)
    jax.block_until_ready((v2, a2))
    v2_ref, a2_ref = _reference(x2, params)
    assert v2.shape == (B2, 1) and a2.shape == (B2, HIDDEN)
    assert jnp.allclose(v2, v2_ref, atol=1e-5, rtol=1e-5)
    assert jnp.allclose(a2, a2_ref, atol=1e-5, rtol=1e-5)

    print("KERNEL_OK")
</pallas_src>

<mosaic_0001>
module attributes {stable_mosaic.version = 11 : i64} {
  func.func @_policy_fused_kernel(%arg0: i32, %arg1: memref<8x32xf32, #tpu.memory_space<vmem>>, %arg2: memref<168x128xf32, #tpu.memory_space<vmem>>, %arg3: memref<8x128xf32, #tpu.memory_space<vmem>>) attributes {dimension_semantics = [#tpu.dimension_semantics<parallel>], iteration_bounds = array<i64: 1>, scalar_prefetch = 0 : i64, scratch_operands = 0 : i64, tpu.core_type = #tpu.core_type<tc>, window_params = [{transform_indices = @transform_0, window_bounds = array<i64: 8, 32>}, {pipeline_mode = #tpu.pipeline_mode<synchronous>, transform_indices = @transform_1, window_bounds = array<i64: 168, 128>}, {transform_indices = @transform_2, window_bounds = array<i64: 8, 128>}]} {
    %c0 = arith.constant 0 : index
    %c0_0 = arith.constant 0 : index
    %0 = vector.load %arg1[%c0, %c0_0] : memref<8x32xf32, #tpu.memory_space<vmem>>, vector<8x32xf32>
    %c0_1 = arith.constant 0 : index
    %c0_2 = arith.constant 0 : index
    %1 = vector.load %arg2[%c0_1, %c0_2] : memref<168x128xf32, #tpu.memory_space<vmem>>, vector<32x128xf32>
    %c32 = arith.constant 32 : index
    %c0_3 = arith.constant 0 : index
    %2 = vector.load %arg2[%c32, %c0_3] : memref<168x128xf32, #tpu.memory_space<vmem>>, vector<128x128xf32>
    %c160 = arith.constant 160 : index
    %c0_4 = arith.constant 0 : index
    %3 = vector.load %arg2[%c160, %c0_4] : memref<168x128xf32, #tpu.memory_space<vmem>>, vector<1x128xf32>
    %c161 = arith.constant 161 : index
    %c0_5 = arith.constant 0 : index
    %4 = vector.load %arg2[%c161, %c0_5] : memref<168x128xf32, #tpu.memory_space<vmem>>, vector<1x128xf32>
    %c162 = arith.constant 162 : index
    %c0_6 = arith.constant 0 : index
    %5 = vector.load %arg2[%c162, %c0_6] : memref<168x128xf32, #tpu.memory_space<vmem>>, vector<1x128xf32>
    %c163 = arith.constant 163 : index
    %c0_7 = arith.constant 0 : index
    %6 = vector.load %arg2[%c163, %c0_7] : memref<168x128xf32, #tpu.memory_space<vmem>>, vector<1x128xf32>
    %cst = arith.constant dense<0.000000e+00> : vector<8x128xf32>
    %7 = tpu.matmul %0, %1, %cst {dimension_numbers = #tpu.dot_dimension_numbers<[1], [0], [0], [1], [0, 0, 1, 1], [], []>} : vector<8x32xf32>, vector<32x128xf32>, vector<8x128xf32> -> vector<8x128xf32>
    %8 = vector.broadcast %3 : vector<1x128xf32> to vector<8x128xf32>
    %9 = arith.addf %7, %8 : vector<8x128xf32>
    %10 = math.tanh %9 : vector<8x128xf32>
    %cst_8 = arith.constant dense<0.000000e+00> : vector<8x128xf32>
    %11 = tpu.matmul %10, %2, %cst_8 {dimension_numbers = #tpu.dot_dimension_numbers<[1], [0], [0], [1], [0, 0, 1, 1], [], []>} : vector<8x128xf32>, vector<128x128xf32>, vector<8x128xf32> -> vector<8x128xf32>
    %12 = vector.broadcast %4 : vector<1x128xf32> to vector<8x128xf32>
    %13 = arith.addf %11, %12 : vector<8x128xf32>
    %14 = math.tanh %13 : vector<8x128xf32>
    %15 = vector.broadcast %5 : vector<1x128xf32> to vector<8x128xf32>
    %16 = arith.mulf %14, %15 : vector<8x128xf32>
    %cst_9 = arith.constant dense<0.000000e+00> : vector<8xf32>
    %17 = vector.multi_reduction <add>, %16, %cst_9 [1] : vector<8x128xf32> to vector<8xf32>
    %18 = vector.shape_cast %17 : vector<8xf32> to vector<8x1xf32>
    %19 = tpu.iota {dimensions = array<i32: 1>} : vector<8x128xi32>
    %c64_i32 = arith.constant 64 : i32
    %20 = vector.broadcast %c64_i32 : i32 to vector<8x128xi32>
    %21 = arith.cmpi slt, %19, %20 : vector<8x128xi32>
    %22 = vector.broadcast %18 : vector<8x1xf32> to vector<8x128xf32>
    %23 = vector.broadcast %6 : vector<1x128xf32> to vector<8x128xf32>
    %24 = arith.addf %22, %23 : vector<8x128xf32>
    %25 = arith.select %21, %14, %24 : vector<8x128xi1>, vector<8x128xf32>
    %c0_10 = arith.constant 0 : index
    %c0_11 = arith.constant 0 : index
    %26 = vector.load %arg3[%c0_10, %c0_11] : memref<8x128xf32, #tpu.memory_space<vmem>>, vector<8x128xf32>
    tpu.vector_store %arg3[%c0_10, %c0_11], %25 {strides = array<i32>} : memref<8x128xf32, #tpu.memory_space<vmem>>, vector<8x128xf32>,
    return
  }
  func.func @transform_0(%arg0: i32) -> (i32, i32) {
    %c0_i32 = arith.constant 0 : i32
    %c0_i32_0 = arith.constant 0 : i32
    return %arg0, %c0_i32 : i32, i32
  }
  func.func @transform_1(%arg0: i32) -> (i32, i32) {
    %c0_i32 = arith.constant 0 : i32
    %c0_i32_0 = arith.constant 0 : i32
    %c0_i32_1 = arith.constant 0 : i32
    return %c0_i32, %c0_i32_0 : i32, i32
  }
  func.func @transform_2(%arg0: i32) -> (i32, i32) {
    %c0_i32 = arith.constant 0 : i32
    %c0_i32_0 = arith.constant 0 : i32
    return %arg0, %c0_i32 : i32, i32
  }
}

</mosaic_0001>

<llo_original>
// kernel: tpu_custom_call.1
$region0: #{tpu_custom_call.1}
  #allocation0 [shape = 'u32[]', space=smem, size = 0x4, offset = 0x4, fixed_abs, tag = 'smem constant byte address 0x4 - core index']
  #allocation1 [shape = 'u32[144,128]{1,0:T(1,128)}', space=vmem, size = 0x12000, scoped, tag = 'internal scratch']
  %s0 = inlined_call_operand.hbm [shape: f32[8,32], index: 0, kind: input, shape index: {}]
  %s1 = inlined_call_operand.hbm [shape: f32[168,128], index: 1, kind: input, shape index: {}]
  %s2 = inlined_call_operand.hbm [shape: f32[8,128], index: 2, kind: output, shape index: {}]
  %s3 = sld [smem:[#allocation0]]
  $region26: #{tpu_custom_call.1} parent=0
    _
  %s5 = ssub.s32 1, %s3
  %s6 = scalar_select 0, %s5, %s3
  $region1: #{tpu_custom_call.1} parent=0
    #allocation2 [shape = 'u8[4096]{0}', space=vmem, size = 0x1000, scoped, tag = 'input window, operand 0, single buffered']
    #allocation3 [shape = 's32[1]{0}', space=sflag, size = 0x4, scoped, tag = 'scoped memory for tpu_custom_call.1']
    #allocation4 [shape = 's32[1]{0}', space=sflag, size = 0x4, scoped, tag = 'scoped memory for tpu_custom_call.1']
    #allocation5 [shape = 'u8[86016]{0}', space=vmem, size = 0x15000, scoped, tag = 'input window, operand 1, single buffered']
    #allocation6 [shape = 's32[1]{0}', space=sflag, size = 0x4, scoped, tag = 'scoped memory for tpu_custom_call.1']
    #allocation7 [shape = 'u8[4096]{0}', space=vmem, size = 0x1000, scoped, tag = 'output window, operand 0, single buffered']
    %7 = vsyncpa [#allocation3], 0
    %8 = vsyncpa [#allocation6], 0
    %9 = vsyncpa [#allocation4], 0
    // Predicated region
    $region2: #{tpu_custom_call.1} parent=1 // pred_check
      _
    $region3: #{tpu_custom_call.1} parent=1 // pred_check_branch
      %11 = sbr.rel (0) target = $region5
    $region4: #{tpu_custom_call.1} parent=1 // pred_region
      %s13 = ssub.s32 128, 128
      %14 = vsyncadd [#allocation3], %s13
      %s16 = sshll.u32 [#allocation2], 4
      %s17 = int_to_ptr.vmem [resolvable:$true] %s16
      %19 = dma.hbm_to_vmem [thread:$0]  %s0, 128, %s17, [#allocation3]
    $region5: #{tpu_custom_call.1} parent=1 // pred_fallthru
      _
    // Predicated region
    $region6: #{tpu_custom_call.1} parent=1 // pred_check
      _
    $region7: #{tpu_custom_call.1} parent=1 // pred_check_branch
      %21 = sbr.rel (0) target = $region9
    $region8: #{tpu_custom_call.1} parent=1 // pred_region
      %s23 = ssub.s32 2688, 2688
      %24 = vsyncadd [#allocation6], %s23
      %s25 = sshll.u32 [#allocation5], 4
      %s26 = int_to_ptr.vmem [resolvable:$true] %s25
      %31 = dma.hbm_to_vmem [thread:$0]  %s1, 2688, %s26, [#allocation6], 128, 128, 8
    $region9: #{tpu_custom_call.1} parent=1 // pred_fallthru
      _
    // Predicated region
    $region10: #{tpu_custom_call.1} parent=1 // pred_check
      _
    $region11: #{tpu_custom_call.1} parent=1 // pred_check_branch
      %33 = sbr.rel (0) target = $region13
    $region12: #{tpu_custom_call.1} parent=1 // pred_region
      %34 = dma.done [#allocation3], 128
    $region13: #{tpu_custom_call.1} parent=1 // pred_fallthru
      _
    // Predicated region
    $region14: #{tpu_custom_call.1} parent=1 // pred_check
      _
    $region15: #{tpu_custom_call.1} parent=1 // pred_check_branch
      %36 = sbr.rel (0) target = $region17
    $region16: #{tpu_custom_call.1} parent=1 // pred_region
      %37 = dma.done [#allocation6], 2688
    $region17: #{tpu_custom_call.1} parent=1 // pred_fallthru
      _
    %v38 = vld [vmem:[#allocation2] sm:$0xff]
    %v39 = vld [vmem:[#allocation5] sm:$0xff]
    %v40 = vld [vmem:[#allocation5 + $0x8] sm:$0xff]
    %v41 = vld [vmem:[#allocation5 + $0x10] sm:$0xff]
    %v42 = vld [vmem:[#allocation5 + $0x18] sm:$0xff]
    %v43 = vld [vmem:[#allocation5 + $0x20] sm:$0xff]
    %v44 = vld [vmem:[#allocation5 + $0x28] sm:$0xff]
    %v45 = vld [vmem:[#allocation5 + $0x30] sm:$0xff]
    %v46 = vld [vmem:[#allocation5 + $0x38] sm:$0xff]
    %v47 = vld [vmem:[#allocation5 + $0x40] sm:$0xff]
    %v48 = vld [vmem:[#allocation5 + $0x48] sm:$0xff]
    %v49 = vld [vmem:[#allocation5 + $0x50] sm:$0xff]
    %v50 = vld [vmem:[#allocation5 + $0x58] sm:$0xff]
    %v51 = vld [vmem:[#allocation5 + $0x60] sm:$0xff]
    %v52 = vld [vmem:[#allocation5 + $0x68] sm:$0xff]
    %v53 = vld [vmem:[#allocation5 + $0x70] sm:$0xff]
    %v54 = vld [vmem:[#allocation5 + $0x78] sm:$0xff]
    %v55 = vld [vmem:[#allocation5 + $0x80] sm:$0xff]
    %v56 = vld [vmem:[#allocation5 + $0x88] sm:$0xff]
    %v57 = vld [vmem:[#allocation5 + $0x90] sm:$0xff]
    %v58 = vld [vmem:[#allocation5 + $0x98] sm:$0xff]
    %v59 = vld [vmem:[#allocation5 + $0xa0] sm:$0x1]
    %v60 = vld [vmem:[#allocation5 + $0xa1] sm:$0x1]
    %v61 = vld [vmem:[#allocation5 + $0xa2] sm:$0x1]
    %v62 = vld [vmem:[#allocation5 + $0xa3] sm:$0x1]
    %v63 = vlaneseq
    %v64 = vshrl.u32 %v63, 7
    %v65 = vsub.s32 0, %v64
    %v66 = vrot.slane %v59, %v65
    %vm67 = vcmask 261120
    %v69 = vsel %vm67, %v38, 0
    %71 = vmatprep.subr.mxu0 0.0
    %72 = vmatpush1.msra.mxu0 %v39
    %73 = vmatprep.subr.mxu0 0.0
    %74 = vmatpush1.msra.mxu0 %v40
    %75 = vmatprep.subr.mxu0 0.0
    %76 = vmatpush1.msra.mxu0 %v41
    %77 = vmatprep.subr.mxu0 0.0
    %78 = vmatpush1.msra.mxu0 %v42
    %79 = vmatprep.subr.mxu0 0.0
    %80 = vmatpush1.msra.mxu0 0.0
    %81 = vmatprep.subr.mxu0 0.0
    %82 = vmatpush1.msra.mxu0 0.0
    %83 = vmatprep.subr.mxu0 0.0
    %84 = vmatpush1.msra.mxu0 0.0
    %85 = vmatprep.subr.mxu0 0.0
    %86 = vmatpush1.msra.mxu0 0.0
    %87 = vmatprep.subr.mxu0 0.0
    %88 = vmatpush1.msra.mxu0 0.0
    %89 = vmatprep.subr.mxu0 0.0
    %90 = vmatpush1.msra.mxu0 0.0
    %91 = vmatprep.subr.mxu0 0.0
    %92 = vmatpush1.msra.mxu0 0.0
    %93 = vmatprep.subr.mxu0 0.0
    %94 = vmatpush1.msra.mxu0 0.0
    %95 = vmatprep.subr.mxu0 0.0
    %96 = vmatpush1.msra.mxu0 0.0
    %97 = vmatprep.subr.mxu0 0.0
    %98 = vmatpush1.msra.mxu0 0.0
    %99 = vmatprep.subr.mxu0 0.0
    %100 = vmatpush1.msra.mxu0 0.0
    %101 = vmatprep.subr.mxu0 0.0
    %102 = vmatpush1.msra.mxu0 0.0
    %103 = vmatprep.subr.mxu0 0.0
    %104 = vmatpush1.msra.mxu0 0.0
    %105 = vmatprep.subr.mxu0 0.0
    %106 = vmatpush1.msra.mxu0 0.0
    %107 = vmatprep.subr.mxu0 0.0
    %108 = vmatpush1.msra.mxu0 0.0
    %109 = vmatprep.subr.mxu0 0.0
    %110 = vmatpush1.msra.mxu0 0.0
    %111 = vmatprep.subr.mxu0 0.0
    %112 = vmatpush1.msra.mxu0 0.0
    %113 = vmatprep.subr.mxu0 0.0
    %114 = vmatpush1.msra.mxu0 0.0
    %115 = vmatprep.subr.mxu0 0.0
    %116 = vmatpush1.msra.mxu0 0.0
    %117 = vmatprep.subr.mxu0 0.0
    %118 = vmatpush1.msra.mxu0 0.0
    %119 = vmatprep.subr.mxu0 0.0
    %120 = vmatpush1.msra.mxu0 0.0
    %121 = vmatprep.subr.mxu0 0.0
    %122 = vmatpush1.msra.mxu0 0.0
    %123 = vmatprep.subr.mxu0 0.0
    %124 = vmatpush1.msra.mxu0 0.0
    %125 = vmatprep.subr.mxu0 0.0
    %126 = vmatpush1.msra.mxu0 0.0
    %127 = vmatprep.subr.mxu0 0.0
    %128 = vmatpush1.msra.mxu0 0.0
    %129 = vmatprep.subr.mxu0 0.0
    %130 = vmatpush1.msra.mxu0 0.0
    %131 = vmatprep.subr.mxu0 0.0
    %132 = vmatpush1.msra.mxu0 0.0
    %133 = vmatprep.subr.mxu0 0.0
    %134 = vmatpush1.msra.mxu0 0.0
    %135 = vmatprep.mubr.f32.mxu0 0.0
    %136 = vmatmul.mubr.f32.gmra.mrb[0].mxu0 %v69
    %v137 = vpop.f32.mrb[0].mxu0
    %v138 = vadd.f32 %v66, %v137
    %v139 = vpop.f32.mrb[0].mxu0
    %140 = vdwg.mxu0
    %v141 = vtanh.pop %v138
    %v142 = vlaneseq
    %v143 = vshrl.u32 %v142, 7
    %v144 = vsub.s32 0, %v143
    %v145 = vrot.slane %v60, %v144
    %146 = vmatprep.subr.mxu0 0.0
    %147 = vmatpush1.msra.mxu0 %v43
    %148 = vmatprep.subr.mxu0 0.0
    %149 = vmatpush1.msra.mxu0 %v44
    %150 = vmatprep.subr.mxu0 0.0
    %151 = vmatpush1.msra.mxu0 %v45
    %152 = vmatprep.subr.mxu0 0.0
    %153 = vmatpush1.msra.mxu0 %v46
    %154 = vmatprep.subr.mxu0 0.0
    %155 = vmatpush1.msra.mxu0 %v47
    %156 = vmatprep.subr.mxu0 0.0
    %157 = vmatpush1.msra.mxu0 %v48
    %158 = vmatprep.subr.mxu0 0.0
    %159 = vmatpush1.msra.mxu0 %v49
    %160 = vmatprep.subr.mxu0 0.0
    %161 = vmatpush1.msra.mxu0 %v50
    %162 = vmatprep.subr.mxu0 0.0
    %163 = vmatpush1.msra.mxu0 %v51
    %164 = vmatprep.subr.mxu0 0.0
    %165 = vmatpush1.msra.mxu0 %v52
    %166 = vmatprep.subr.mxu0 0.0
    %167 = vmatpush1.msra.mxu0 %v53
    %168 = vmatprep.subr.mxu0 0.0
    %169 = vmatpush1.msra.mxu0 %v54
    %170 = vmatprep.subr.mxu0 0.0
    %171 = vmatpush1.msra.mxu0 %v55
    %172 = vmatprep.subr.mxu0 0.0
    %173 = vmatpush1.msra.mxu0 %v56
    %174 = vmatprep.subr.mxu0 0.0
    %175 = vmatpush1.msra.mxu0 %v57
    %176 = vmatprep.subr.mxu0 0.0
    %177 = vmatpush1.msra.mxu0 %v58
    %178 = vmatprep.subr.mxu0 0.0
    %179 = vmatpush1.msra.mxu0 0.0
    %180 = vmatprep.subr.mxu0 0.0
    %181 = vmatpush1.msra.mxu0 0.0
    %182 = vmatprep.subr.mxu0 0.0
    %183 = vmatpush1.msra.mxu0 0.0
    %184 = vmatprep.subr.mxu0 0.0
    %185 = vmatpush1.msra.mxu0 0.0
    %186 = vmatprep.subr.mxu0 0.0
    %187 = vmatpush1.msra.mxu0 0.0
    %188 = vmatprep.subr.mxu0 0.0
    %189 = vmatpush1.msra.mxu0 0.0
    %190 = vmatprep.subr.mxu0 0.0
    %191 = vmatpush1.msra.mxu0 0.0
    %192 = vmatprep.subr.mxu0 0.0
    %193 = vmatpush1.msra.mxu0 0.0
    %194 = vmatprep.subr.mxu0 0.0
    %195 = vmatpush1.msra.mxu0 0.0
    %196 = vmatprep.subr.mxu0 0.0
    %197 = vmatpush1.msra.mxu0 0.0
    %198 = vmatprep.subr.mxu0 0.0
    %199 = vmatpush1.msra.mxu0 0.0
    %200 = vmatprep.subr.mxu0 0.0
    %201 = vmatpush1.msra.mxu0 0.0
    %202 = vmatprep.subr.mxu0 0.0
    %203 = vmatpush1.msra.mxu0 0.0
    %204 = vmatprep.subr.mxu0 0.0
    %205 = vmatpush1.msra.mxu0 0.0
    %206 = vmatprep.subr.mxu0 0.0
    %207 = vmatpush1.msra.mxu0 0.0
    %208 = vmatprep.subr.mxu0 0.0
    %209 = vmatpush1.msra.mxu0 0.0
    %210 = vmatprep.mubr.f32.mxu0 0.0
    %211 = vmatmul.mubr.f32.gmra.mrb[0].mxu0 %v141
    %v212 = vpop.f32.mrb[0].mxu0
    %v213 = vadd.f32 %v145, %v212
    %v214 = vpop.f32.mrb[0].mxu0
    %215 = vdwg.mxu0
    %v216 = vtanh.pop %v213
    %v217 = vlaneseq
    %v218 = vshrl.u32 %v217, 7
    %v219 = vsub.s32 0, %v218
    %v220 = vrot.slane %v61, %v219
    %v221 = vmul.f32 %v216, %v220
    %222 = vadd.xlane.f32.xlu0 %v221
    %v223 = vpop.xlane.xlu0 %222
    %v224 = vlaneseq
    %v225 = vand.u32 %v224, 127
    %vm226 = vcmp.lt.s32.totalorder %v225, 64
    %v227 = vlaneseq
    %v228 = vshrl.u32 %v227, 7
    %v229 = vsub.s32 0, %v228
    %v230 = vrot.slane %v62, %v229
    %v231 = vadd.f32 %v223, %v230
    %v232 = vsel %vm226, %v216, %v231
    %233 = vst [vmem:[#allocation7] sm:$0xff] %v232
    // Predicated region
    $region18: #{tpu_custom_call.1} parent=1 // pred_check
      _
    $region19: #{tpu_custom_call.1} parent=1 // pred_check_branch
      %235 = sbr.rel (0) target = $region21
    $region20: #{tpu_custom_call.1} parent=1 // pred_region
      %s237 = ssub.s32 128, 128
      %238 = vsyncadd [#allocation4], %s237
      %s240 = sshll.u32 [#allocation7], 4
      %s241 = int_to_ptr.vmem [resolvable:$true] %s240
      %243 = dma.vmem_to_hbm [thread:$0]  %s241, 128, %s2, [#allocation4]
    $region21: #{tpu_custom_call.1} parent=1 // pred_fallthru
      _
    // Predicated region
    $region22: #{tpu_custom_call.1} parent=1 // pred_check
      _
    $region23: #{tpu_custom_call.1} parent=1 // pred_check_branch
      %245 = sbr.rel (0) target = $region25
    $region24: #{tpu_custom_call.1} parent=1 // pred_region
      %246 = dma.done [#allocation4], 128
    $region25: #{tpu_custom_call.1} parent=1 // pred_fallthru
      _
    %247 = vsyncpa [#allocation3], 1
    %248 = vsyncpa [#allocation6], 1
    %249 = vsyncpa [#allocation4], 1

</llo_original>
